<compile_context>
chip_gen: v6e
topology: v6e:2x2x1
jax: 0.10.0
libtpu: 0.0.40
codegen_flags: <defaults>
</compile_context>

<pallas_src>
import jax
import jax.numpy as jnp
from jax.experimental import pallas as pl
from jax.experimental.pallas import tpu as pltpu


def _soft_ce_rowloss_kernel(x_ref, t_ref, out_ref):
    x = x_ref[...].astype(jnp.float32)          # (bn, C)
    t = t_ref[...].astype(jnp.float32)          # (bn, C)

    # numerically-stable logsumexp along the class (lane) axis
    m = jnp.max(x, axis=-1, keepdims=True)                              # (bn, 1)
    lse = m + jnp.log(jnp.sum(jnp.exp(x - m), axis=-1, keepdims=True))  # (bn, 1)

    # sum_c(-t * (x - lse)) == lse * sum_c(t) - sum_c(t * x)
    sum_t = jnp.sum(t, axis=-1, keepdims=True)                          # (bn, 1)
    sum_tx = jnp.sum(t * x, axis=-1, keepdims=True)                     # (bn, 1)
    out_ref[...] = lse * sum_t - sum_tx                                 # (bn, 1)


def _round_up(v, m):
    return ((v + m - 1) // m) * m


def _row_align(dtype):
    # minimum second-to-last-dim tile per dtype (sublane packing)
    return {4: 8, 2: 16, 1: 32}.get(jnp.dtype(dtype).itemsize, 8)


def soft_target_cross_entropy(x, target, *, block_rows=None,
                              vmem_input_budget_bytes=24 * 1024 * 1024):
    """x: (N_rep, C) logits, target: (N, C) soft labels. Returns scalar f32."""
    n_rep, c = x.shape
    n, c_t = target.shape
    assert c == c_t, "class dims must match"
    assert n_rep % n == 0, "x rows must be an integer multiple of target rows"
    rep = n_rep // n

    row_align = max(_row_align(x.dtype), _row_align(target.dtype))

    # Largest block_rows (multiple of row_align) whose double-buffered input
    # tiles (x + target) fit the VMEM budget.
    bytes_per_row = c * (jnp.dtype(x.dtype).itemsize + jnp.dtype(target.dtype).itemsize)
    max_rows = max(
        row_align,
        (vmem_input_budget_bytes // (2 * bytes_per_row)) // row_align * row_align,
    )

    if rep > 1 and n % row_align != 0:
        # Glue fallback: target rows not tile-aligned, materialize the repeat.
        # TODO(synk): could avoid this with pl.Element-style row gather.
        target = jnp.tile(target, (rep, 1))
        n = n_rep
        rep = 1

    if rep > 1:
        # block_rows must divide n so the modulo index_map maps whole blocks.
        if block_rows is None:
            block_rows = row_align
            d = (min(n, max_rows) // row_align) * row_align
            while d >= row_align:
                if n % d == 0:
                    block_rows = d
                    break
                d -= row_align
        assert n % block_rows == 0 and block_rows % row_align == 0
        rows_padded = n_rep                      # block_rows | n | n_rep
        blocks_per_target = n // block_rows
    else:
        if block_rows is None:
            block_rows = min(max_rows, _round_up(n_rep, row_align))
        assert block_rows % row_align == 0
        rows_padded = _round_up(n_rep, block_rows)
        if rows_padded != n_rep:
            pad = rows_padded - n_rep
            # zero target rows contribute exactly 0 loss; zero logits keep lse finite
            x = jnp.pad(x, ((0, pad), (0, 0)))
            target = jnp.pad(target, ((0, pad), (0, 0)))
        blocks_per_target = rows_padded // block_rows

    grid = (rows_padded // block_rows,)

    x_spec = pl.BlockSpec((block_rows, c), lambda i: (i, 0))
    # row replication of target expressed directly in the index_map (no jnp.tile)
    t_spec = pl.BlockSpec((block_rows, c),
                          lambda i, _b=blocks_per_target: (i % _b, 0))
    out_spec = pl.BlockSpec((block_rows, 1), lambda i: (i, 0))

    row_losses = pl.pallas_call(
        _soft_ce_rowloss_kernel,
        out_shape=jax.ShapeDtypeStruct((rows_padded, 1), jnp.float32),
        grid_spec=pltpu.PrefetchScalarGridSpec(
            num_scalar_prefetch=0,
            grid=grid,
            in_specs=[x_spec, t_spec],
            out_specs=out_spec,
        ),
        compiler_params=pltpu.CompilerParams(
            dimension_semantics=("parallel",),   # independent row blocks -> megacore-friendly
            vmem_limit_bytes=32 * 1024 * 1024,   # safe on v5e/v6e/v7x; inputs budgeted <= 24 MiB
        ),
    )(x, target)

    # tiny final reduction (padded rows are exactly zero)
    return jnp.sum(row_losses) / jnp.float32(n_rep)


def _reference(x, target):
    n_rep = x.shape[0]
    n = target.shape[0]
    if n != n_rep:
        target = jnp.tile(target, (n_rep // n, 1))
    logp = jax.nn.log_softmax(x.astype(jnp.float32), axis=-1)
    return jnp.mean(jnp.sum(-target.astype(jnp.float32) * logp, axis=-1))


if __name__ == "__main__":
    key = jax.random.PRNGKey(0)
    k1, k2 = jax.random.split(key)

    N, C = 16, 32
    x = jax.random.normal(k1, (N, C), dtype=jnp.float32)
    # soft targets (e.g. from mixup / label smoothing): rows sum to 1
    target = jax.nn.softmax(jax.random.normal(k2, (N, C), dtype=jnp.float32), axis=-1)

    # 1) plain path
    loss = jax.block_until_ready(soft_target_cross_entropy(x, target))
    ref = _reference(x, target)
    assert jnp.allclose(loss, ref, rtol=1e-5, atol=1e-5), (loss, ref)

    # 2) target-has-fewer-rows repeat path (handled via modulo index_map, no jnp.tile)
    loss2 = jax.block_until_ready(soft_target_cross_entropy(x, target[: N // 2]))
    ref2 = _reference(x, target[: N // 2])
    assert jnp.allclose(loss2, ref2, rtol=1e-5, atol=1e-5), (loss2, ref2)

    # 3) row count not a multiple of the tile -> exercises the zero-padding path
    loss3 = jax.block_until_ready(soft_target_cross_entropy(x[:10], target[:10]))
    ref3 = _reference(x[:10], target[:10])
    assert jnp.allclose(loss3, ref3, rtol=1e-5, atol=1e-5), (loss3, ref3)

    print("KERNEL_OK")
</pallas_src>

<mosaic_0001>
module attributes {stable_mosaic.version = 11 : i64} {
  func.func @_soft_ce_rowloss_kernel(%arg0: i32, %arg1: memref<16x32xf32, #tpu.memory_space<vmem>>, %arg2: memref<16x32xf32, #tpu.memory_space<vmem>>, %arg3: memref<16x1xf32, #tpu.memory_space<vmem>>) attributes {dimension_semantics = [#tpu.dimension_semantics<parallel>], iteration_bounds = array<i64: 1>, scalar_prefetch = 0 : i64, scratch_operands = 0 : i64, tpu.core_type = #tpu.core_type<tc>, window_params = [{transform_indices = @transform_0, window_bounds = array<i64: 16, 32>}, {transform_indices = @transform_1, window_bounds = array<i64: 16, 32>}, {transform_indices = @transform_2, window_bounds = array<i64: 16, 1>}]} {
    %c0 = arith.constant 0 : index
    %c0_0 = arith.constant 0 : index
    %0 = vector.load %arg1[%c0, %c0_0] : memref<16x32xf32, #tpu.memory_space<vmem>>, vector<16x32xf32>
    %c0_1 = arith.constant 0 : index
    %c0_2 = arith.constant 0 : index
    %1 = vector.load %arg2[%c0_1, %c0_2] : memref<16x32xf32, #tpu.memory_space<vmem>>, vector<16x32xf32>
    %cst = arith.constant dense<0xFF800000> : vector<16xf32>
    %2 = vector.multi_reduction <maximumf>, %0, %cst [1] : vector<16x32xf32> to vector<16xf32>
    %3 = vector.shape_cast %2 : vector<16xf32> to vector<16x1xf32>
    %4 = vector.broadcast %3 : vector<16x1xf32> to vector<16x32xf32>
    %5 = arith.subf %0, %4 : vector<16x32xf32>
    %6 = math.exp %5 : vector<16x32xf32>
    %cst_3 = arith.constant dense<0.000000e+00> : vector<16xf32>
    %7 = vector.multi_reduction <add>, %6, %cst_3 [1] : vector<16x32xf32> to vector<16xf32>
    %8 = vector.shape_cast %7 : vector<16xf32> to vector<16x1xf32>
    %9 = math.log %8 : vector<16x1xf32>
    %10 = arith.addf %3, %9 : vector<16x1xf32>
    %cst_4 = arith.constant dense<0.000000e+00> : vector<16xf32>
    %11 = vector.multi_reduction <add>, %1, %cst_4 [1] : vector<16x32xf32> to vector<16xf32>
    %12 = vector.shape_cast %11 : vector<16xf32> to vector<16x1xf32>
    %13 = arith.mulf %1, %0 : vector<16x32xf32>
    %cst_5 = arith.constant dense<0.000000e+00> : vector<16xf32>
    %14 = vector.multi_reduction <add>, %13, %cst_5 [1] : vector<16x32xf32> to vector<16xf32>
    %15 = vector.shape_cast %14 : vector<16xf32> to vector<16x1xf32>
    %16 = arith.mulf %10, %12 : vector<16x1xf32>
    %17 = arith.subf %16, %15 : vector<16x1xf32>
    %c0_6 = arith.constant 0 : index
    %c0_7 = arith.constant 0 : index
    %18 = vector.load %arg3[%c0_6, %c0_7] : memref<16x1xf32, #tpu.memory_space<vmem>>, vector<16x1xf32>
    tpu.vector_store %arg3[%c0_6, %c0_7], %17 {strides = array<i32>} : memref<16x1xf32, #tpu.memory_space<vmem>>, vector<16x1xf32>,
    return
  }
  func.func @transform_0(%arg0: i32) -> (i32, i32) {
    %c0_i32 = arith.constant 0 : i32
    %c0_i32_0 = arith.constant 0 : i32
    return %arg0, %c0_i32 : i32, i32
  }
  func.func @transform_1(%arg0: i32) -> (i32, i32) {
    %c1_i32 = arith.constant 1 : i32
    %c0_i32 = arith.constant 0 : i32
    %0 = arith.cmpi eq, %c1_i32, %c0_i32 : i32
    %c1_i32_0 = arith.constant 1 : i32
    %1 = arith.select %0, %c1_i32_0, %c1_i32 : i32
    %2 = arith.remsi %arg0, %1 : i32
    %c0_i32_1 = arith.constant 0 : i32
    %3 = arith.cmpi ne, %2, %c0_i32_1 : i32
    %c0_i32_2 = arith.constant 0 : i32
    %4 = arith.cmpi slt, %2, %c0_i32_2 : i32
    %c0_i32_3 = arith.constant 0 : i32
    %5 = arith.cmpi slt, %1, %c0_i32_3 : i32
    %6 = arith.xori %4, %5 : i1
    %7 = arith.andi %6, %3 : i1
    %8 = arith.addi %2, %1 : i32
    %9 = arith.select %7, %8, %2 : i32
    %c0_i32_4 = arith.constant 0 : i32
    %c0_i32_5 = arith.constant 0 : i32
    return %9, %c0_i32_4 : i32, i32
  }
  func.func @transform_2(%arg0: i32) -> (i32, i32) {
    %c0_i32 = arith.constant 0 : i32
    %c0_i32_0 = arith.constant 0 : i32
    return %arg0, %c0_i32 : i32, i32
  }
}

</mosaic_0001>

<llo_original>
// kernel: tpu_custom_call.1
$region0: #{tpu_custom_call.1}
  #allocation0 [shape = 'u32[]', space=smem, size = 0x4, offset = 0x4, fixed_abs, tag = 'smem constant byte address 0x4 - core index']
  #allocation1 [shape = 'u32[144,128]{1,0:T(1,128)}', space=vmem, size = 0x12000, scoped, tag = 'internal scratch']
  %s0 = inlined_call_operand.hbm [shape: f32[16,32], index: 0, kind: input, shape index: {}]
  %s1 = inlined_call_operand.hbm [shape: f32[16,32], index: 1, kind: input, shape index: {}]
  %s2 = inlined_call_operand.vmem [shape: f32[16,1], index: 2, kind: output, shape index: {}]
  %s3 = sld [smem:[#allocation0]]
  $region26: #{tpu_custom_call.1} parent=0
    _
  %s5 = ssub.s32 1, %s3
  %s6 = scalar_select 0, %s5, %s3
  $region1: #{tpu_custom_call.1} parent=0
    #allocation2 [shape = 'u8[8192]{0}', space=vmem, size = 0x2000, scoped, tag = 'input window, operand 0, single buffered']
    #allocation3 [shape = 's32[1]{0}', space=sflag, size = 0x4, scoped, tag = 'scoped memory for tpu_custom_call.1']
    #allocation4 [shape = 'u8[8192]{0}', space=vmem, size = 0x2000, scoped, tag = 'input window, operand 1, single buffered']
    #allocation5 [shape = 's32[1]{0}', space=sflag, size = 0x4, scoped, tag = 'scoped memory for tpu_custom_call.1']
    %7 = vsyncpa [#allocation3], 0
    %8 = vsyncpa [#allocation5], 0
    // Predicated region
    $region2: #{tpu_custom_call.1} parent=1 // pred_check
      _
    $region3: #{tpu_custom_call.1} parent=1 // pred_check_branch
      %10 = sbr.rel (0) target = $region5
    $region4: #{tpu_custom_call.1} parent=1 // pred_region
      %s12 = ssub.s32 256, 256
      %13 = vsyncadd [#allocation3], %s12
      %s14 = sshll.u32 [#allocation2], 4
      %s15 = int_to_ptr.vmem [resolvable:$true] %s14
      %20 = dma.hbm_to_vmem [thread:$0]  %s0, 256, %s15, [#allocation3], 128, 128, 8
    $region5: #{tpu_custom_call.1} parent=1 // pred_fallthru
      _
    // Predicated region
    $region6: #{tpu_custom_call.1} parent=1 // pred_check
      _
    $region7: #{tpu_custom_call.1} parent=1 // pred_check_branch
      %22 = sbr.rel (0) target = $region9
    $region8: #{tpu_custom_call.1} parent=1 // pred_region
      %s24 = ssub.s32 256, 256
      %25 = vsyncadd [#allocation5], %s24
      %s26 = sshll.u32 [#allocation4], 4
      %s27 = int_to_ptr.vmem [resolvable:$true] %s26
      %32 = dma.hbm_to_vmem [thread:$0]  %s1, 256, %s27, [#allocation5], 128, 128, 8
    $region9: #{tpu_custom_call.1} parent=1 // pred_fallthru
      _
    // Predicated region
    $region10: #{tpu_custom_call.1} parent=1 // pred_check
      _
    $region11: #{tpu_custom_call.1} parent=1 // pred_check_branch
      %34 = sbr.rel (0) target = $region13
    $region12: #{tpu_custom_call.1} parent=1 // pred_region
      %35 = dma.done [#allocation3], 256
    $region13: #{tpu_custom_call.1} parent=1 // pred_fallthru
      _
    // Predicated region
    $region14: #{tpu_custom_call.1} parent=1 // pred_check
      _
    $region15: #{tpu_custom_call.1} parent=1 // pred_check_branch
      %37 = sbr.rel (0) target = $region17
    $region16: #{tpu_custom_call.1} parent=1 // pred_region
      %38 = dma.done [#allocation5], 256
    $region17: #{tpu_custom_call.1} parent=1 // pred_fallthru
      _
    %v39 = vld [vmem:[#allocation2] sm:$0xff]
    %v40 = vld [vmem:[#allocation2 + $0x8] sm:$0xff]
    %v41 = vld [vmem:[#allocation4] sm:$0xff]
    %v42 = vld [vmem:[#allocation4 + $0x8] sm:$0xff]
    %vm43 = vcmask 261120
    %v44 = vsel %vm43, %v39, -inf
    %45 = vmax.xlane.f32.xlu0 %v44
    %v46 = vpop.xlane.xlu0 %45
    %v47 = vsel %vm43, %v40, -inf
    %48 = vmax.xlane.f32.xlu0 %v47
    %v49 = vpop.xlane.xlu0 %48
    %v50 = vsub.f32 %v39, %v46
    %v51 = vsub.f32 %v40, %v49
    %v52 = vmul.f32 %v50, 1.442695
    %v53 = vpow.pop %v52
    %v54 = vmul.f32 %v51, 1.442695
    %v55 = vpow.pop %v54
    %v56 = vsel %vm43, %v53, 0.0
    %57 = vadd.xlane.f32.xlu0 %v56
    %v58 = vpop.xlane.xlu0 %57
    %v59 = vsel %vm43, %v55, 0.0
    %60 = vadd.xlane.f32.xlu0 %v59
    %v61 = vpop.xlane.xlu0 %60
    %v62 = vlog2.pop %v58
    %v63 = vmul.f32 %v62, 0.6931472
    %v64 = vlog2.pop %v61
    %v65 = vmul.f32 %v64, 0.6931472
    %v66 = vadd.f32 %v46, %v63
    %v67 = vadd.f32 %v49, %v65
    %v68 = vsel %vm43, %v41, 0.0
    %69 = vadd.xlane.f32.xlu0 %v68
    %v70 = vpop.xlane.xlu0 %69
    %v71 = vsel %vm43, %v42, 0.0
    %72 = vadd.xlane.f32.xlu0 %v71
    %v73 = vpop.xlane.xlu0 %72
    %v74 = vmul.f32 %v41, %v39
    %v75 = vmul.f32 %v42, %v40
    %v76 = vsel %vm43, %v74, 0.0
    %77 = vadd.xlane.f32.xlu0 %v76
    %v78 = vpop.xlane.xlu0 %77
    %v79 = vsel %vm43, %v75, 0.0
    %80 = vadd.xlane.f32.xlu0 %v79
    %v81 = vpop.xlane.xlu0 %80
    %v82 = vmul.f32 %v66, %v70
    %v83 = vmul.f32 %v67, %v73
    %v84 = vsub.f32 %v82, %v78
    %v85 = vsub.f32 %v83, %v81
    %vm86 = vcmask 7168
    %87 = vst.msk [vmem:[%s2] sm:$0xff] %vm86, %v84
    %88 = vst.msk [vmem:[%s2 + $0x8] sm:$0xff] %vm86, %v85
    // Predicated region
    $region18: #{tpu_custom_call.1} parent=1 // pred_check
      _
    $region19: #{tpu_custom_call.1} parent=1 // pred_check_branch
      %90 = sbr.rel (0) target = $region21
    $region20: #{tpu_custom_call.1} parent=1 // pred_region
      _
    $region21: #{tpu_custom_call.1} parent=1 // pred_fallthru
      _
    // Predicated region
    $region22: #{tpu_custom_call.1} parent=1 // pred_check
      _
    $region23: #{tpu_custom_call.1} parent=1 // pred_check_branch
      %92 = sbr.rel (0) target = $region25
    $region24: #{tpu_custom_call.1} parent=1 // pred_region
      _
    $region25: #{tpu_custom_call.1} parent=1 // pred_fallthru
      _
    %93 = vsyncpa [#allocation3], 1
    %94 = vsyncpa [#allocation5], 1

</llo_original>
